<compile_context>
chip_gen: v7x
topology: tpu7x:2x2x1
jax: 0.10.0
libtpu: 0.0.40
codegen_flags: <defaults>
</compile_context>

<pallas_src>
import jax
import jax.numpy as jnp
from jax.experimental import pallas as pl
from jax.experimental.pallas import tpu as pltpu

KSIZE = 5
HALF = KSIZE // 2
EDGE_PER_TILE = 12  # per-tile boundary scalars in the SMEM edge table


def spatial_attention_kernel(w_ref, edge_ref, x_ref, o_ref):
    # w_ref:    SMEM f32[5]                   effective 1-D conv taps
    # edge_ref: SMEM f32[12 * num_tiles]      per-tile boundary scalars (see wrapper)
    # x_ref/o_ref: VMEM dtype[TR, C]          one sublane/lane-dense tile of the flat vector
    x = x_ref[...].astype(jnp.float32)
    tr, c = x.shape

    # Hoist the 5 taps once per grid step (each splat appears exactly once).
    w0 = w_ref[0]
    w1 = w_ref[1]
    w2 = w_ref[2]
    w3 = w_ref[3]
    w4 = w_ref[4]

    lane = jax.lax.broadcasted_iota(jnp.int32, x.shape, 1)

    # Row-shifted copies in flat row-major order (wrap within the tile):
    #   x_down[r] = x[(r + 1) % tr],  x_up[r] = x[(r - 1) % tr]
    x_down = pltpu.roll(x, shift=tr - 1, axis=0)
    x_up = pltpu.roll(x, shift=1, axis=0)

    # 5-tap 1-D cross-correlation along the flattened (row-major) axis:
    #   conv[i] = sum_{s=-2..2} w[s+2] * x_flat[i+s]
    # The within-tile row wrap makes exactly 4 outputs per tile wrong
    # (flat 0, 1, end-2, end-1); they are patched by the scalar fix-up below,
    # so no full-tile halo masks are needed.
    conv = w2 * x
    conv = conv + w3 * pltpu.roll(jnp.where(lane < 1, x_down, x), shift=c - 1, axis=1)
    conv = conv + w4 * pltpu.roll(jnp.where(lane < 2, x_down, x), shift=c - 2, axis=1)
    conv = conv + w1 * pltpu.roll(jnp.where(lane >= c - 1, x_up, x), shift=1, axis=1)
    conv = conv + w0 * pltpu.roll(jnp.where(lane >= c - 2, x_up, x), shift=2, axis=1)

    o_ref[...] = (x * jnp.maximum(conv, 0.0)).astype(o_ref.dtype)

    # ---- scalar fix-up of the 4 tile-boundary outputs (pure SMEM/scalar math) ----
    base = pl.program_id(0) * EDGE_PER_TILE
    h0 = edge_ref[base + 0]    # x[start-2]  (0 outside the array)
    h1 = edge_ref[base + 1]    # x[start-1]
    a0 = edge_ref[base + 2]    # x[start+0]
    a1 = edge_ref[base + 3]    # x[start+1]
    a2 = edge_ref[base + 4]    # x[start+2]
    a3 = edge_ref[base + 5]    # x[start+3]
    b3 = edge_ref[base + 6]    # x[end-4]
    b2 = edge_ref[base + 7]    # x[end-3]
    b1 = edge_ref[base + 8]    # x[end-2]
    b0 = edge_ref[base + 9]    # x[end-1]
    h2 = edge_ref[base + 10]   # x[end]      (0 outside the array)
    h3 = edge_ref[base + 11]   # x[end+1]

    o_a0 = a0 * jnp.maximum(w0 * h0 + w1 * h1 + w2 * a0 + w3 * a1 + w4 * a2, 0.0)
    o_a1 = a1 * jnp.maximum(w0 * h1 + w1 * a0 + w2 * a1 + w3 * a2 + w4 * a3, 0.0)
    o_b1 = b1 * jnp.maximum(w0 * b3 + w1 * b2 + w2 * b1 + w3 * b0 + w4 * h2, 0.0)
    o_b0 = b0 * jnp.maximum(w0 * b2 + w1 * b1 + w2 * b0 + w3 * h2 + w4 * h3, 0.0)

    li = jax.lax.broadcasted_iota(jnp.int32, (1, 128), 1)

    head = o_ref[0:1, 0:128]                      # patch flat positions 0, 1
    head = jnp.where(li == 0, o_a0.astype(head.dtype), head)
    head = jnp.where(li == 1, o_a1.astype(head.dtype), head)
    o_ref[0:1, 0:128] = head

    tail = o_ref[tr - 1:tr, c - 128:c]            # patch flat positions end-2, end-1
    tail = jnp.where(li == 126, o_b1.astype(tail.dtype), tail)
    tail = jnp.where(li == 127, o_b0.astype(tail.dtype), tail)
    o_ref[tr - 1:tr, c - 128:c] = tail


def _cdiv(a, b):
    return -(-a // b)


def _round_up(a, m):
    return _cdiv(a, m) * m


def _pick_rows_per_tile(r_total, max_rows):
    """Largest multiple of 8 that divides r_total and is <= max_rows, preferring an
    even (or single) tile count so the 'parallel' grid axis splits evenly across the
    two v7x TensorCores."""
    cands = [tr for tr in range(8, min(r_total, max_rows) + 1, 8) if r_total % tr == 0]
    if not cands:                 # unreachable when 8 | r_total; kept as a guard
        return 8

    def score(tr):
        nt = r_total // tr
        return (1 if (nt == 1 or nt % 2 == 0) else 0, tr)

    return max(cands, key=score)


def spatial_attention_pallas(inputs, conv_weight, *, lane_width=None, rows_per_tile=None,
                             max_tile_bytes=2 * 1024 * 1024):
    """inputs: any-shape float array; conv_weight: f32[1, 2, 5, 5] (PyTorch OIHW).

    lane_width (if given) must be a multiple of 128 and rows_per_tile a multiple of 8;
    rows_per_tile acts as an upper bound on the tile's sublane extent.
    """
    flat = inputs.reshape(-1)
    if not jnp.issubdtype(flat.dtype, jnp.floating):
        flat = flat.astype(jnp.float32)
    n = flat.shape[0]
    itemsize = jnp.dtype(flat.dtype).itemsize

    if rows_per_tile is not None:
        assert rows_per_tile % 8 == 0, "rows_per_tile must be a multiple of 8"

    # Exact collapse of the 2-channel 5x5 conv to 5 1-D taps (see module header).
    w_eff = (conv_weight[0, 0, HALF, :] + conv_weight[0, 1, HALF, :]).astype(jnp.float32)

    lane_cands = (lane_width,) if lane_width is not None else (512, 256, 128)

    # ---- fast path: n reshapes losslessly into (R, C); zero extra HBM round trips ----
    c = None
    padded = False
    for cw in lane_cands:
        assert cw % 128 == 0, "lane_width must be a multiple of 128"
        if n % cw != 0 or (n // cw) % 8 != 0:
            continue
        r_tot = n // cw
        max_rows = rows_per_tile if rows_per_tile is not None else max(
            8, (max_tile_bytes // (cw * itemsize)) // 8 * 8)
        tr_cand = _pick_rows_per_tile(r_tot, max_rows)
        nt = r_tot // tr_cand
        if rows_per_tile is None and nt > 8 and tr_cand < 64:
            continue  # divisor-starved: many tiny tiles; try another width or pad
        c, tr, r_total, num_tiles = cw, tr_cand, r_tot, nt
        x2d = flat.reshape(r_total, c)
        break

    # ---- fallback for ragged sizes: zero-pad the tail (one extra HBM round trip) ----
    if c is None:
        c = lane_width if lane_width is not None else 512
        max_rows = rows_per_tile if rows_per_tile is not None else max(
            8, (max_tile_bytes // (c * itemsize)) // 8 * 8)
        rows_needed = _cdiv(n + HALF, c)        # >= HALF trailing zeros == conv zero pad
        tr = min(max_rows, _round_up(rows_needed, 8))
        r_total = _round_up(rows_needed, tr)
        num_tiles = r_total // tr
        x2d = jnp.pad(flat, (0, r_total * c - n)).reshape(r_total, c)
        padded = True

    # Per-tile boundary scalars for the in-kernel fix-up (tiny gather; zeros out of range):
    # [x[s-2], x[s-1], x[s], x[s+1], x[s+2], x[s+3],
    #  x[e-4], x[e-3], x[e-2], x[e-1], x[e], x[e+1]]  with s = t*tile_elems, e = s+tile_elems.
    tile_elems = tr * c
    starts = jnp.arange(num_tiles, dtype=jnp.int32) * tile_elems
    rel = jnp.array([-2, -1, 0, 1, 2, 3,
                     tile_elems - 4, tile_elems - 3, tile_elems - 2, tile_elems - 1,
                     tile_elems, tile_elems + 1], dtype=jnp.int32)
    idx = starts[:, None] + rel[None, :]
    valid = (idx >= 0) & (idx < n)
    edge = jnp.where(valid, flat[jnp.clip(idx, 0, n - 1)], 0).astype(jnp.float32).reshape(-1)

    tile_bytes = tile_elems * itemsize
    vmem_limit = int(min(64 * 1024 * 1024, max(32 * 1024 * 1024, 5 * tile_bytes)))

    out2d = pl.pallas_call(
        spatial_attention_kernel,
        out_shape=jax.ShapeDtypeStruct((r_total, c), flat.dtype),
        grid=(num_tiles,),
        in_specs=[
            pl.BlockSpec(memory_space=pltpu.MemorySpace.SMEM),   # w_eff (5,)
            pl.BlockSpec(memory_space=pltpu.MemorySpace.SMEM),   # edge  (12*num_tiles,)
            pl.BlockSpec((tr, c), lambda t: (t, 0)),             # input tile (VMEM)
        ],
        out_specs=pl.BlockSpec((tr, c), lambda t: (t, 0)),       # lane/sublane-dense out
        compiler_params=pltpu.CompilerParams(
            dimension_semantics=("parallel",),                   # megacore sharding on v7x
            vmem_limit_bytes=vmem_limit,
        ),
    )(w_eff, edge, x2d)

    out_flat = out2d.reshape(-1)
    if padded:
        out_flat = out_flat[:n]            # only on the ragged-size fallback path
    return out_flat.reshape(1, 1, n)       # == outputs.view(1, 1, -1)


def spatial_attention_reference(inputs, conv_weight):
    """Pure-JAX reference reproducing the PyTorch module verbatim."""
    flat = inputs.reshape(1, 1, 1, -1).astype(jnp.float32)
    x2 = jnp.concatenate([flat, flat], axis=1)     # max/mean over size-1 dim = identity
    conv = jax.lax.conv_general_dilated(
        x2, conv_weight, window_strides=(1, 1),
        padding=((HALF, HALF), (HALF, HALF)),
        dimension_numbers=("NCHW", "OIHW", "NCHW"),
        precision=jax.lax.Precision.HIGHEST)
    attn = jnp.maximum(conv, 0.0)
    return (flat * attn).reshape(1, 1, -1)


if __name__ == "__main__":
    key = jax.random.PRNGKey(0)
    k_x, k_w, k_x2, k_x3 = jax.random.split(key, 4)

    # Small NCHW input consistent with a conv-attention module.
    x = jax.random.normal(k_x, (2, 4, 16, 16), dtype=jnp.float32)
    # Deterministic Conv2d(2 -> 1, 5x5, bias=False) weight, OIHW.
    conv_w = jax.random.normal(k_w, (1, 2, KSIZE, KSIZE), dtype=jnp.float32) * 0.1

    out = jax.block_until_ready(spatial_attention_pallas(x, conv_w))
    ref = spatial_attention_reference(x, conv_w)
    assert out.shape == ref.shape == (1, 1, x.size)
    assert jnp.allclose(out, ref, atol=1e-5, rtol=1e-5), "mismatch vs reference (single tile)"

    # Multi-tile fast path (exercises the cross-tile scalar boundary fix-up).
    x2 = jax.random.normal(k_x2, (1, 3, 32, 32), dtype=jnp.float32)
    out2 = jax.block_until_ready(
        spatial_attention_pallas(x2, conv_w, lane_width=128, rows_per_tile=8))
    ref2 = spatial_attention_reference(x2, conv_w)
    assert jnp.allclose(out2, ref2, atol=1e-5, rtol=1e-5), "mismatch vs reference (multi tile)"

    # Ragged size -> padded fallback path.
    x3 = jax.random.normal(k_x3, (1, 1, 5, 37), dtype=jnp.float32)
    out3 = jax.block_until_ready(spatial_attention_pallas(x3, conv_w))
    ref3 = spatial_attention_reference(x3, conv_w)
    assert jnp.allclose(out3, ref3, atol=1e-5, rtol=1e-5), "mismatch vs reference (ragged)"

    print("KERNEL_OK")
</pallas_src>

<mosaic_0001>
module attributes {stable_mosaic.version = 11 : i64} {
  func.func @spatial_attention_kernel(%arg0: i32, %arg1: memref<5xf32, #tpu.memory_space<smem>>, %arg2: memref<12xf32, #tpu.memory_space<smem>>, %arg3: memref<8x256xf32, #tpu.memory_space<vmem>>, %arg4: memref<8x256xf32, #tpu.memory_space<vmem>>) attributes {dimension_semantics = [#tpu.dimension_semantics<parallel>], iteration_bounds = array<i64: 1>, scalar_prefetch = 0 : i64, scratch_operands = 0 : i64, tpu.core_type = #tpu.core_type<tc>, window_params = [{transform_indices = @transform_0, window_bounds = array<i64: 5>}, {transform_indices = @transform_1, window_bounds = array<i64: 12>}, {transform_indices = @transform_2, window_bounds = array<i64: 8, 256>}, {transform_indices = @transform_3, window_bounds = array<i64: 8, 256>}]} {
    %c0 = arith.constant 0 : index
    %c0_0 = arith.constant 0 : index
    %0 = vector.load %arg3[%c0, %c0_0] : memref<8x256xf32, #tpu.memory_space<vmem>>, vector<8x256xf32>
    %c0_1 = arith.constant 0 : index
    %1 = memref.load %arg1[%c0_1] : memref<5xf32, #tpu.memory_space<smem>>
    %c1 = arith.constant 1 : index
    %2 = memref.load %arg1[%c1] : memref<5xf32, #tpu.memory_space<smem>>
    %c2 = arith.constant 2 : index
    %3 = memref.load %arg1[%c2] : memref<5xf32, #tpu.memory_space<smem>>
    %c3 = arith.constant 3 : index
    %4 = memref.load %arg1[%c3] : memref<5xf32, #tpu.memory_space<smem>>
    %c4 = arith.constant 4 : index
    %5 = memref.load %arg1[%c4] : memref<5xf32, #tpu.memory_space<smem>>
    %6 = tpu.iota {dimensions = array<i32: 1>} : vector<8x256xi32>
    %c7_i32 = arith.constant 7 : i32
    %7 = tpu.dynamic_rotate %0 by %c7_i32 dim 0 : vector<8x256xf32>, i32 -> vector<8x256xf32>
    %c1_i32 = arith.constant 1 : i32
    %8 = tpu.dynamic_rotate %0 by %c1_i32 dim 0 : vector<8x256xf32>, i32 -> vector<8x256xf32>
    %9 = vector.broadcast %3 : f32 to vector<8x256xf32>
    %10 = arith.mulf %9, %0 : vector<8x256xf32>
    %c1_i32_2 = arith.constant 1 : i32
    %11 = vector.broadcast %c1_i32_2 : i32 to vector<8x256xi32>
    %12 = arith.cmpi slt, %6, %11 : vector<8x256xi32>
    %13 = arith.select %12, %7, %0 : vector<8x256xi1>, vector<8x256xf32>
    %c255_i32 = arith.constant 255 : i32
    %14 = tpu.dynamic_rotate %13 by %c255_i32 dim 1 : vector<8x256xf32>, i32 -> vector<8x256xf32>
    %15 = vector.broadcast %4 : f32 to vector<8x256xf32>
    %16 = arith.mulf %15, %14 : vector<8x256xf32>
    %17 = arith.addf %10, %16 : vector<8x256xf32>
    %c2_i32 = arith.constant 2 : i32
    %18 = vector.broadcast %c2_i32 : i32 to vector<8x256xi32>
    %19 = arith.cmpi slt, %6, %18 : vector<8x256xi32>
    %20 = arith.select %19, %7, %0 : vector<8x256xi1>, vector<8x256xf32>
    %c254_i32 = arith.constant 254 : i32
    %21 = tpu.dynamic_rotate %20 by %c254_i32 dim 1 : vector<8x256xf32>, i32 -> vector<8x256xf32>
    %22 = vector.broadcast %5 : f32 to vector<8x256xf32>
    %23 = arith.mulf %22, %21 : vector<8x256xf32>
    %24 = arith.addf %17, %23 : vector<8x256xf32>
    %c255_i32_3 = arith.constant 255 : i32
    %25 = vector.broadcast %c255_i32_3 : i32 to vector<8x256xi32>
    %26 = arith.cmpi sge, %6, %25 : vector<8x256xi32>
    %27 = arith.select %26, %8, %0 : vector<8x256xi1>, vector<8x256xf32>
    %c1_i32_4 = arith.constant 1 : i32
    %28 = tpu.dynamic_rotate %27 by %c1_i32_4 dim 1 : vector<8x256xf32>, i32 -> vector<8x256xf32>
    %29 = vector.broadcast %2 : f32 to vector<8x256xf32>
    %30 = arith.mulf %29, %28 : vector<8x256xf32>
    %31 = arith.addf %24, %30 : vector<8x256xf32>
    %c254_i32_5 = arith.constant 254 : i32
    %32 = vector.broadcast %c254_i32_5 : i32 to vector<8x256xi32>
    %33 = arith.cmpi sge, %6, %32 : vector<8x256xi32>
    %34 = arith.select %33, %8, %0 : vector<8x256xi1>, vector<8x256xf32>
    %c2_i32_6 = arith.constant 2 : i32
    %35 = tpu.dynamic_rotate %34 by %c2_i32_6 dim 1 : vector<8x256xf32>, i32 -> vector<8x256xf32>
    %36 = vector.broadcast %1 : f32 to vector<8x256xf32>
    %37 = arith.mulf %36, %35 : vector<8x256xf32>
    %38 = arith.addf %31, %37 : vector<8x256xf32>
    %cst = arith.constant 0.000000e+00 : f32
    %39 = vector.broadcast %cst : f32 to vector<8x256xf32>
    %40 = arith.maximumf %38, %39 : vector<8x256xf32>
    %41 = arith.mulf %0, %40 : vector<8x256xf32>
    %c0_7 = arith.constant 0 : index
    %c0_8 = arith.constant 0 : index
    %42 = vector.load %arg4[%c0_7, %c0_8] : memref<8x256xf32, #tpu.memory_space<vmem>>, vector<8x256xf32>
    tpu.vector_store %arg4[%c0_7, %c0_8], %41 {strides = array<i32>} : memref<8x256xf32, #tpu.memory_space<vmem>>, vector<8x256xf32>,
    %c12_i32 = arith.constant 12 : i32
    %43 = arith.muli %arg0, %c12_i32 : i32
    %c0_i32 = arith.constant 0 : i32
    %44 = arith.addi %43, %c0_i32 : i32
    %45 = arith.index_cast %44 : i32 to index
    %46 = memref.load %arg2[%45] : memref<12xf32, #tpu.memory_space<smem>>
    %c1_i32_9 = arith.constant 1 : i32
    %47 = arith.addi %43, %c1_i32_9 : i32
    %48 = arith.index_cast %47 : i32 to index
    %49 = memref.load %arg2[%48] : memref<12xf32, #tpu.memory_space<smem>>
    %c2_i32_10 = arith.constant 2 : i32
    %50 = arith.addi %43, %c2_i32_10 : i32
    %51 = arith.index_cast %50 : i32 to index
    %52 = memref.load %arg2[%51] : memref<12xf32, #tpu.memory_space<smem>>
    %c3_i32 = arith.constant 3 : i32
    %53 = arith.addi %43, %c3_i32 : i32
    %54 = arith.index_cast %53 : i32 to index
    %55 = memref.load %arg2[%54] : memref<12xf32, #tpu.memory_space<smem>>
    %c4_i32 = arith.constant 4 : i32
    %56 = arith.addi %43, %c4_i32 : i32
    %57 = arith.index_cast %56 : i32 to index
    %58 = memref.load %arg2[%57] : memref<12xf32, #tpu.memory_space<smem>>
    %c5_i32 = arith.constant 5 : i32
    %59 = arith.addi %43, %c5_i32 : i32
    %60 = arith.index_cast %59 : i32 to index
    %61 = memref.load %arg2[%60] : memref<12xf32, #tpu.memory_space<smem>>
    %c6_i32 = arith.constant 6 : i32
    %62 = arith.addi %43, %c6_i32 : i32
    %63 = arith.index_cast %62 : i32 to index
    %64 = memref.load %arg2[%63] : memref<12xf32, #tpu.memory_space<smem>>
    %c7_i32_11 = arith.constant 7 : i32
    %65 = arith.addi %43, %c7_i32_11 : i32
    %66 = arith.index_cast %65 : i32 to index
    %67 = memref.load %arg2[%66] : memref<12xf32, #tpu.memory_space<smem>>
    %c8_i32 = arith.constant 8 : i32
    %68 = arith.addi %43, %c8_i32 : i32
    %69 = arith.index_cast %68 : i32 to index
    %70 = memref.load %arg2[%69] : memref<12xf32, #tpu.memory_space<smem>>
    %c9_i32 = arith.constant 9 : i32
    %71 = arith.addi %43, %c9_i32 : i32
    %72 = arith.index_cast %71 : i32 to index
    %73 = memref.load %arg2[%72] : memref<12xf32, #tpu.memory_space<smem>>
    %c10_i32 = arith.constant 10 : i32
    %74 = arith.addi %43, %c10_i32 : i32
    %75 = arith.index_cast %74 : i32 to index
    %76 = memref.load %arg2[%75] : memref<12xf32, #tpu.memory_space<smem>>
    %c11_i32 = arith.constant 11 : i32
    %77 = arith.addi %43, %c11_i32 : i32
    %78 = arith.index_cast %77 : i32 to index
    %79 = memref.load %arg2[%78] : memref<12xf32, #tpu.memory_space<smem>>
    %80 = arith.mulf %1, %46 : f32
    %81 = arith.mulf %2, %49 : f32
    %82 = arith.addf %80, %81 : f32
    %83 = arith.mulf %3, %52 : f32
    %84 = arith.addf %82, %83 : f32
    %85 = arith.mulf %4, %55 : f32
    %86 = arith.addf %84, %85 : f32
    %87 = arith.mulf %5, %58 : f32
    %88 = arith.addf %86, %87 : f32
    %cst_12 = arith.constant 0.000000e+00 : f32
    %89 = arith.maximumf %88, %cst_12 : f32
    %90 = arith.mulf %52, %89 : f32
    %91 = arith.mulf %1, %49 : f32
    %92 = arith.mulf %2, %52 : f32
    %93 = arith.addf %91, %92 : f32
    %94 = arith.mulf %3, %55 : f32
    %95 = arith.addf %93, %94 : f32
    %96 = arith.mulf %4, %58 : f32
    %97 = arith.addf %95, %96 : f32
    %98 = arith.mulf %5, %61 : f32
    %99 = arith.addf %97, %98 : f32
    %cst_13 = arith.constant 0.000000e+00 : f32
    %100 = arith.maximumf %99, %cst_13 : f32
    %101 = arith.mulf %55, %100 : f32
    %102 = arith.mulf %1, %64 : f32
    %103 = arith.mulf %2, %67 : f32
    %104 = arith.addf %102, %103 : f32
    %105 = arith.mulf %3, %70 : f32
    %106 = arith.addf %104, %105 : f32
    %107 = arith.mulf %4, %73 : f32
    %108 = arith.addf %106, %107 : f32
    %109 = arith.mulf %5, %76 : f32
    %110 = arith.addf %108, %109 : f32
    %cst_14 = arith.constant 0.000000e+00 : f32
    %111 = arith.maximumf %110, %cst_14 : f32
    %112 = arith.mulf %70, %111 : f32
    %113 = arith.mulf %1, %67 : f32
    %114 = arith.mulf %2, %70 : f32
    %115 = arith.addf %113, %114 : f32
    %116 = arith.mulf %3, %73 : f32
    %117 = arith.addf %115, %116 : f32
    %118 = arith.mulf %4, %76 : f32
    %119 = arith.addf %117, %118 : f32
    %120 = arith.mulf %5, %79 : f32
    %121 = arith.addf %119, %120 : f32
    %cst_15 = arith.constant 0.000000e+00 : f32
    %122 = arith.maximumf %121, %cst_15 : f32
    %123 = arith.mulf %73, %122 : f32
    %124 = tpu.iota {dimensions = array<i32: 1>} : vector<1x128xi32>
    %c0_16 = arith.constant 0 : index
    %c0_17 = arith.constant 0 : index
    %125 = vector.load %arg4[%c0_16, %c0_17] : memref<8x256xf32, #tpu.memory_space<vmem>>, vector<1x128xf32>
    %c0_i32_18 = arith.constant 0 : i32
    %126 = vector.broadcast %c0_i32_18 : i32 to vector<1x128xi32>
    %127 = arith.cmpi eq, %124, %126 : vector<1x128xi32>
    %128 = vector.broadcast %90 : f32 to vector<1x128xf32>
    %129 = arith.select %127, %128, %125 : vector<1x128xi1>, vector<1x128xf32>
    %c1_i32_19 = arith.constant 1 : i32
    %130 = vector.broadcast %c1_i32_19 : i32 to vector<1x128xi32>
    %131 = arith.cmpi eq, %124, %130 : vector<1x128xi32>
    %132 = vector.broadcast %101 : f32 to vector<1x128xf32>
    %133 = arith.select %131, %132, %129 : vector<1x128xi1>, vector<1x128xf32>
    %c0_20 = arith.constant 0 : index
    %c0_21 = arith.constant 0 : index
    %134 = vector.load %arg4[%c0_20, %c0_21] : memref<8x256xf32, #tpu.memory_space<vmem>>, vector<1x128xf32>
    tpu.vector_store %arg4[%c0_20, %c0_21], %133 {strides = array<i32>} : memref<8x256xf32, #tpu.memory_space<vmem>>, vector<1x128xf32>,
    %c7 = arith.constant 7 : index
    %c128 = arith.constant 128 : index
    %135 = vector.load %arg4[%c7, %c128] : memref<8x256xf32, #tpu.memory_space<vmem>>, vector<1x128xf32>
    %c126_i32 = arith.constant 126 : i32
    %136 = vector.broadcast %c126_i32 : i32 to vector<1x128xi32>
    %137 = arith.cmpi eq, %124, %136 : vector<1x128xi32>
    %138 = vector.broadcast %112 : f32 to vector<1x128xf32>
    %139 = arith.select %137, %138, %135 : vector<1x128xi1>, vector<1x128xf32>
    %c127_i32 = arith.constant 127 : i32
    %140 = vector.broadcast %c127_i32 : i32 to vector<1x128xi32>
    %141 = arith.cmpi eq, %124, %140 : vector<1x128xi32>
    %142 = vector.broadcast %123 : f32 to vector<1x128xf32>
    %143 = arith.select %141, %142, %139 : vector<1x128xi1>, vector<1x128xf32>
    %c7_22 = arith.constant 7 : index
    %c128_23 = arith.constant 128 : index
    %144 = vector.load %arg4[%c7_22, %c128_23] : memref<8x256xf32, #tpu.memory_space<vmem>>, vector<1x128xf32>
    tpu.vector_store %arg4[%c7_22, %c128_23], %143 {strides = array<i32>} : memref<8x256xf32, #tpu.memory_space<vmem>>, vector<1x128xf32>,
    return
  }
  func.func @transform_0(%arg0: i32) -> i32 {
    %c0_i32 = arith.constant 0 : i32
    %c0_i32_0 = arith.constant 0 : i32
    return %c0_i32 : i32
  }
  func.func @transform_1(%arg0: i32) -> i32 {
    %c0_i32 = arith.constant 0 : i32
    %c0_i32_0 = arith.constant 0 : i32
    return %c0_i32 : i32
  }
  func.func @transform_2(%arg0: i32) -> (i32, i32) {
    %c0_i32 = arith.constant 0 : i32
    %c0_i32_0 = arith.constant 0 : i32
    return %arg0, %c0_i32 : i32, i32
  }
  func.func @transform_3(%arg0: i32) -> (i32, i32) {
    %c0_i32 = arith.constant 0 : i32
    %c0_i32_0 = arith.constant 0 : i32
    return %arg0, %c0_i32 : i32, i32
  }
}

</mosaic_0001>

<llo_original>
// kernel: tpu_custom_call.1
$region0: #{tpu_custom_call.1}
  #allocation0 [shape = 'u32[]', space=smem, size = 0x4, offset = 0x4, fixed_abs, tag = 'smem constant byte address 0x4 - core index']
  #allocation1 [shape = 'u32[144,128]{1,0:T(1,128)}', space=vmem, size = 0x12000, scoped, tag = 'internal scratch']
  %s0 = inlined_call_operand.hbm [shape: f32[5], index: 0, kind: input, shape index: {}]
  %s1 = inlined_call_operand.vmem [shape: f32[12], index: 1, kind: input, shape index: {}]
  %s2 = inlined_call_operand.hbm [shape: f32[8,256], index: 2, kind: input, shape index: {}]
  %s3 = inlined_call_operand.hbm [shape: f32[8,256], index: 3, kind: output, shape index: {}]
  %s4 = sld [smem:[#allocation0]]
  $region34: #{tpu_custom_call.1} parent=0
    _
  %s6 = ssub.s32 1, %s4
  %s7 = scalar_select 0, %s6, %s4
  $region1: #{tpu_custom_call.1} parent=0
    #allocation2 [shape = 'u8[512]{0}', space=smem, size = 0x200, scoped, tag = 'input window, operand 0, single buffered']
    #allocation3 [shape = 's32[1]{0}', space=sflag, size = 0x4, scoped, tag = 'scoped memory for tpu_custom_call.1']
    #allocation4 [shape = 's32[1]{0}', space=sflag, size = 0x4, scoped, tag = 'scoped memory for tpu_custom_call.1']
    #allocation5 [shape = 's32[1]{0}', space=sflag, size = 0x4, scoped, tag = 'scoped memory for tpu_custom_call.1']
    #allocation6 [shape = 's32[1]{0}', space=sflag, size = 0x4, scoped, tag = 'scoped memory for tpu_custom_call.1']
    #allocation7 [shape = 'u8[512]{0}', space=smem, size = 0x200, scoped, tag = 'input window, operand 1, single buffered']
    #allocation8 [shape = 'u8[8192]{0}', space=vmem, size = 0x2000, scoped, tag = 'input window, operand 2, single buffered']
    #allocation9 [shape = 'u8[8192]{0}', space=vmem, size = 0x2000, scoped, tag = 'output window, operand 0, single buffered']
    %8 = vsyncpa [#allocation5], 0
    %9 = vsyncpa [#allocation6], 0
    %10 = vsyncpa [#allocation3], 0
    %11 = vsyncpa [#allocation4], 0
    // Predicated region
    $region2: #{tpu_custom_call.1} parent=1 // pred_check
      _
    $region3: #{tpu_custom_call.1} parent=1 // pred_check_branch
      %13 = sbr.rel (0) target = $region5
    $region4: #{tpu_custom_call.1} parent=1 // pred_region
      %s15 = ssub.s32 16, 16
      %16 = vsyncadd [#allocation5], %s15
      %19 = dma.hbm_to_smem %s0, 16, [#allocation2], [#allocation5]
    $region5: #{tpu_custom_call.1} parent=1 // pred_fallthru
      _
    // Predicated region
    $region6: #{tpu_custom_call.1} parent=1 // pred_check
      _
    $region7: #{tpu_custom_call.1} parent=1 // pred_check_branch
      %21 = sbr.rel (0) target = $region9
    $region8: #{tpu_custom_call.1} parent=1 // pred_region
      %s23 = ssub.s32 16, 16
      %24 = vsyncadd [#allocation6], %s23
      %s26 = sshll.u32 %s1, 4
      %s27 = int_to_ptr.vmem [resolvable:$true] %s26
      %29 = dma.vmem_to_smem %s27, 16, [#allocation7], [#allocation6]
    $region9: #{tpu_custom_call.1} parent=1 // pred_fallthru
      _
    // Predicated region
    $region10: #{tpu_custom_call.1} parent=1 // pred_check
      _
    $region11: #{tpu_custom_call.1} parent=1 // pred_check_branch
      %31 = sbr.rel (0) target = $region13
    $region12: #{tpu_custom_call.1} parent=1 // pred_region
      %s33 = ssub.s32 256, 256
      %34 = vsyncadd [#allocation3], %s33
      %s36 = sshll.u32 [#allocation8], 4
      %s37 = int_to_ptr.vmem [resolvable:$true] %s36
      %39 = dma.hbm_to_vmem [thread:$0]  %s2, 256, %s37, [#allocation3]
    $region13: #{tpu_custom_call.1} parent=1 // pred_fallthru
      _
    // Predicated region
    $region14: #{tpu_custom_call.1} parent=1 // pred_check
      _
    $region15: #{tpu_custom_call.1} parent=1 // pred_check_branch
      %41 = sbr.rel (0) target = $region17
    $region16: #{tpu_custom_call.1} parent=1 // pred_region
      %42 = dma.done [#allocation5], 16
    $region17: #{tpu_custom_call.1} parent=1 // pred_fallthru
      _
    // Predicated region
    $region18: #{tpu_custom_call.1} parent=1 // pred_check
      _
    $region19: #{tpu_custom_call.1} parent=1 // pred_check_branch
      %44 = sbr.rel (0) target = $region21
    $region20: #{tpu_custom_call.1} parent=1 // pred_region
      %45 = dma.done [#allocation6], 16
    $region21: #{tpu_custom_call.1} parent=1 // pred_fallthru
      _
    // Predicated region
    $region22: #{tpu_custom_call.1} parent=1 // pred_check
      _
    $region23: #{tpu_custom_call.1} parent=1 // pred_check_branch
      %47 = sbr.rel (0) target = $region25
    $region24: #{tpu_custom_call.1} parent=1 // pred_region
      %48 = dma.done [#allocation3], 256
    $region25: #{tpu_custom_call.1} parent=1 // pred_fallthru
      _
    %49 = sfence
    %v50 = vld [vmem:[#allocation8] sm:$0xff]
    %v51 = vld [vmem:[#allocation8 + $0x8] sm:$0xff]
    %s52 = sld [smem:[#allocation2]]
    %s53 = sld [smem:[#allocation2 + $0x1]]
    %s54 = sld [smem:[#allocation2 + $0x2]]
    %s55 = sld [smem:[#allocation2 + $0x3]]
    %s56 = sld [smem:[#allocation2 + $0x4]]
    %v57 = vlaneseq
    %v58 = vand.u32 %v57, 127
    %v59 = vadd.s32 %v58, 128
    %v60 = vrot.slane %v50, 1
    %v61 = vrot.slane %v51, 1
    %v62 = vrot.slane %v50, 7
    %v63 = vrot.slane %v51, 7
    %v64 = vstv %s54
    %v65 = vmul.f32 %v64, %v50
    %v66 = vmul.f32 %v64, %v51
    %vm67 = vcmp.lt.s32.totalorder %v58, 1
    %vm68 = vcmp.lt.s32.totalorder %v59, 1
    %v69 = vsel %vm67, %v60, %v50
    %v70 = vsel %vm68, %v61, %v51
    %71 = vrot.lane.b32.xlu0 %v69, 127
    %v72 = vpop.permute.xlu0 %71
    %73 = vrot.lane.b32.xlu0 %v70, 127
    %v74 = vpop.permute.xlu0 %73
    %vm75 = vcmp.lt.s32.totalorder %v58, 127
    %v76 = vsel %vm75, %v72, %v74
    %v77 = vsel %vm75, %v74, %v72
    %v78 = vstv %s55
    %v79 = vmul.f32 %v78, %v76
    %v80 = vmul.f32 %v78, %v77
    %v81 = vadd.f32 %v65, %v79
    %v82 = vadd.f32 %v66, %v80
    %vm83 = vcmp.lt.s32.totalorder %v58, 2
    %vm84 = vcmp.lt.s32.totalorder %v59, 2
    %v85 = vsel %vm83, %v60, %v50
    %v86 = vsel %vm84, %v61, %v51
    %87 = vrot.lane.b32.xlu0 %v85, 126
    %v88 = vpop.permute.xlu0 %87
    %89 = vrot.lane.b32.xlu0 %v86, 126
    %v90 = vpop.permute.xlu0 %89
    %vm91 = vcmp.lt.s32.totalorder %v58, 126
    %v92 = vsel %vm91, %v88, %v90
    %v93 = vsel %vm91, %v90, %v88
    %v94 = vstv %s56
    %v95 = vmul.f32 %v94, %v92
    %v96 = vmul.f32 %v94, %v93
    %v97 = vadd.f32 %v81, %v95
    %v98 = vadd.f32 %v82, %v96
    %vm99 = vcmp.ge.s32.totalorder %v58, 255
    %vm100 = vcmp.ge.s32.totalorder %v59, 255
    %v101 = vsel %vm99, %v62, %v50
    %v102 = vsel %vm100, %v63, %v51
    %103 = vrot.lane.b32.xlu0 %v101, 1
    %v104 = vpop.permute.xlu0 %103
    %105 = vrot.lane.b32.xlu0 %v102, 1
    %v106 = vpop.permute.xlu0 %105
    %v107 = vsel %vm67, %v104, %v106
    %v108 = vsel %vm67, %v106, %v104
    %v109 = vstv %s53
    %v110 = vmul.f32 %v109, %v108
    %v111 = vmul.f32 %v109, %v107
    %v112 = vadd.f32 %v97, %v110
    %v113 = vadd.f32 %v98, %v111
    %vm114 = vcmp.ge.s32.totalorder %v58, 254
    %vm115 = vcmp.ge.s32.totalorder %v59, 254
    %v116 = vsel %vm114, %v62, %v50
    %v117 = vsel %vm115, %v63, %v51
    %118 = vrot.lane.b32.xlu0 %v116, 2
    %v119 = vpop.permute.xlu0 %118
    %120 = vrot.lane.b32.xlu0 %v117, 2
    %v121 = vpop.permute.xlu0 %120
    %v122 = vsel %vm83, %v119, %v121
    %v123 = vsel %vm83, %v121, %v119
    %v124 = vstv %s52
    %v125 = vmul.f32 %v124, %v123
    %v126 = vmul.f32 %v124, %v122
    %v127 = vadd.f32 %v112, %v125
    %v128 = vadd.f32 %v113, %v126
    %v129 = vmax.f32 %v127, 0.0
    %v130 = vmax.f32 %v128, 0.0
    %v131 = vmul.f32 %v50, %v129
    %v132 = vmul.f32 %v51, %v130
    %133 = vst [vmem:[#allocation9] sm:$0xff] %v131
    %134 = vst [vmem:[#allocation9 + $0x8] sm:$0xff] %v132
    %s135 = smul.u32 0, 12
    %s136 = sld [smem:[#allocation7 + %s135]]
    %s137 = sadd.s32 %s135, 1
    %s138 = sld [smem:[#allocation7 + %s137]]
    %s139 = sadd.s32 %s135, 2
    %s140 = sld [smem:[#allocation7 + %s139]]
    %s141 = sadd.s32 %s135, 3
    %s142 = sld [smem:[#allocation7 + %s141]]
    %s143 = sadd.s32 %s135, 4
    %s144 = sld [smem:[#allocation7 + %s143]]
    %s145 = sadd.s32 %s135, 5
    %s146 = sld [smem:[#allocation7 + %s145]]
    %s147 = sadd.s32 %s135, 6
    %s148 = sld [smem:[#allocation7 + %s147]]
    %s149 = sadd.s32 %s135, 7
    %s150 = sld [smem:[#allocation7 + %s149]]
    %s151 = sadd.s32 %s135, 8
    %s152 = sld [smem:[#allocation7 + %s151]]
    %s153 = sadd.s32 %s135, 9
    %s154 = sld [smem:[#allocation7 + %s153]]
    %s155 = sadd.s32 %s135, 10
    %s156 = sld [smem:[#allocation7 + %s155]]
    %s157 = sadd.s32 %s135, 11
    %s158 = sld [smem:[#allocation7 + %s157]]
    %s159 = smul.f32 %s52, %s136
    %s160 = smul.f32 %s53, %s138
    %s161 = sadd.f32 %s159, %s160
    %s162 = smul.f32 %s54, %s140
    %s163 = sadd.f32 %s161, %s162
    %s164 = smul.f32 %s55, %s142
    %s165 = sadd.f32 %s163, %s164
    %s166 = smul.f32 %s56, %s144
    %s167 = sadd.f32 %s165, %s166
    %s168 = smax.f32 %s167, 0.0
    %s169 = smul.f32 %s140, %s168
    %s170 = smul.f32 %s52, %s138
    %s171 = smul.f32 %s53, %s140
    %s172 = sadd.f32 %s170, %s171
    %s173 = smul.f32 %s54, %s142
    %s174 = sadd.f32 %s172, %s173
    %s175 = smul.f32 %s55, %s144
    %s176 = sadd.f32 %s174, %s175
    %s177 = smul.f32 %s56, %s146
    %s178 = sadd.f32 %s176, %s177
    %s179 = smax.f32 %s178, 0.0
    %s180 = smul.f32 %s142, %s179
    %s181 = smul.f32 %s52, %s148
    %s182 = smul.f32 %s53, %s150
    %s183 = sadd.f32 %s181, %s182
    %s184 = smul.f32 %s54, %s152
    %s185 = sadd.f32 %s183, %s184
    %s186 = smul.f32 %s55, %s154
    %s187 = sadd.f32 %s185, %s186
    %s188 = smul.f32 %s56, %s156
    %s189 = sadd.f32 %s187, %s188
    %s190 = smax.f32 %s189, 0.0
    %s191 = smul.f32 %s152, %s190
    %s192 = smul.f32 %s52, %s150
    %s193 = smul.f32 %s53, %s152
    %s194 = sadd.f32 %s192, %s193
    %s195 = smul.f32 %s54, %s154
    %s196 = sadd.f32 %s194, %s195
    %s197 = smul.f32 %s55, %s156
    %s198 = sadd.f32 %s196, %s197
    %s199 = smul.f32 %s56, %s158
    %s200 = sadd.f32 %s198, %s199
    %s201 = smax.f32 %s200, 0.0
    %s202 = smul.f32 %s154, %s201
    %v203 = vld [vmem:[#allocation9] ss:$0 sm:$0xff]
    %vm204 = vcmp.eq.s32.totalorder %v58, 0
    %v205 = vstv %s169
    %v206 = vsel %vm204, %v205, %v203
    %vm207 = vcmp.eq.s32.totalorder %v58, 1
    %v208 = vstv %s180
    %v209 = vsel %vm207, %v208, %v206
    %210 = vst [vmem:[#allocation9] sm:$0x1] %v209
    %v211 = vld [vmem:[#allocation9 + $0xf] ss:$0 sm:$0xff]
    %vm212 = vcmp.eq.s32.totalorder %v58, 126
    %v213 = vstv %s191
    %v214 = vsel %vm212, %v213, %v211
    %vm215 = vcmp.eq.s32.totalorder %v58, 127
    %v216 = vstv %s202
    %v217 = vsel %vm215, %v216, %v214
    %218 = vst [vmem:[#allocation9 + $0xf] sm:$0x1] %v217
    // Predicated region
    $region26: #{tpu_custom_call.1} parent=1 // pred_check
      _
    $region27: #{tpu_custom_call.1} parent=1 // pred_check_branch
      %220 = sbr.rel (0) target = $region29
    $region28: #{tpu_custom_call.1} parent=1 // pred_region
      %s222 = ssub.s32 256, 256
      %223 = vsyncadd [#allocation4], %s222
      %s225 = sshll.u32 [#allocation9], 4
      %s226 = int_to_ptr.vmem [resolvable:$true] %s225
      %228 = dma.vmem_to_hbm [thread:$0]  %s226, 256, %s3, [#allocation4]
    $region29: #{tpu_custom_call.1} parent=1 // pred_fallthru
      _
    // Predicated region
    $region30: #{tpu_custom_call.1} parent=1 // pred_check
      _
    $region31: #{tpu_custom_call.1} parent=1 // pred_check_branch
      %230 = sbr.rel (0) target = $region33
    $region32: #{tpu_custom_call.1} parent=1 // pred_region
      %231 = dma.done [#allocation4], 256
    $region33: #{tpu_custom_call.1} parent=1 // pred_fallthru
      _
    %232 = vsyncpa [#allocation3], 1
    %233 = vsyncpa [#allocation4], 1
    %234 = vsyncpa [#allocation5], 1
    %235 = vsyncpa [#allocation6], 1

</llo_original>
